<compile_context>
chip_gen: v7x
topology: tpu7x:2x2x1
jax: 0.10.0
libtpu: 0.0.40
codegen_flags: <defaults>
</compile_context>

<pallas_src>
import jax
import jax.numpy as jnp
from jax.experimental import pallas as pl
from jax.experimental.pallas import tpu as pltpu

# ---------------- configuration (small, hardware-friendly shapes) ----------------
B                 = 2
S_FRAME           = 32      # frame sequence length
FRAME_DIM         = 128     # config['FRAME_DIM']      (lane-dense: multiple of 128)
HIDDEN            = 128     # config['HIDDEN_SIZE']    (lane-dense: multiple of 128)
MAX_FRAME_SEQ_LEN = 64      # config['MAX_FRAME_SEQ_LEN']
FRAME_LN_EPS      = 1e-5    # nn.LayerNorm(FRAME_DIM, eps=1e-05)
LN_EPS            = 1e-5    # nn.LayerNorm(HIDDEN), torch default eps = 1e-05

_VMEM = pl.BlockSpec(memory_space=pltpu.MemorySpace.VMEM)   # whole array resident in VMEM

# Rows of the single packed (8, 128) parameter tile.
_ROW_FLN_G, _ROW_FLN_B, _ROW_LN_G, _ROW_LN_B, _ROW_M0, _ROW_M1 = 0, 1, 2, 3, 4, 5


# ------------------------------ fused kernel ------------------------------
def _make_kernel(use_mask: bool):
    """Build the fused kernel; `use_mask` is a trace-time Python flag (2 variants)."""

    def kernel(*refs):
        if use_mask:
            x_ref, fm_ref, w_ref, pk_ref, add_ref, o_ref = refs
        else:
            x_ref, w_ref, pk_ref, add_ref, o_ref = refs

        rows, F = x_ref.shape
        H = w_ref.shape[1]

        pk = pk_ref[...]                                   # (8, 128) packed params, 1 DMA
        fln_g = pk[_ROW_FLN_G:_ROW_FLN_G + 1, :F]          # (1, F)
        fln_b = pk[_ROW_FLN_B:_ROW_FLN_B + 1, :F]
        ln_g  = pk[_ROW_LN_G:_ROW_LN_G + 1, :H]            # (1, H)
        ln_b  = pk[_ROW_LN_B:_ROW_LN_B + 1, :H]

        x = x_ref[...]                                     # (rows, F) f32

        if use_mask:
            # embedding(frame_masks.long()) for indices {0,1}: a single vsel per vreg.
            m0 = pk[_ROW_M0:_ROW_M0 + 1, :F]               # (1, F) padding row (idx 0)
            m1 = pk[_ROW_M1:_ROW_M1 + 1, :F]               # (1, F)
            sel = fm_ref[...] >= 1.0                       # (rows, 1); matches .long() trunc
            x = x + jnp.where(sel, m1, m0)

        # frame_layer_norm over FRAME_DIM (f32, eps = 1e-5)
        mu  = jnp.mean(x, axis=-1, keepdims=True)
        var = jnp.mean(jnp.square(x - mu), axis=-1, keepdims=True)
        xn  = (x - mu) * jax.lax.rsqrt(var + FRAME_LN_EPS) * fln_g + fln_b

        # frame_linear on the MXU: bf16 operands, f32 accumulation.
        y = jnp.dot(xn.astype(jnp.bfloat16), w_ref[...],
                    preferred_element_type=jnp.float32)    # (rows, H)

        # + (position embeddings + linear bias [+ type embeddings]) pre-folded slab
        y = y + add_ref[...]

        # final LayerNorm over HIDDEN (f32, eps = 1e-5); dropout is identity at inference
        mu2  = jnp.mean(y, axis=-1, keepdims=True)
        var2 = jnp.mean(jnp.square(y - mu2), axis=-1, keepdims=True)
        o_ref[...] = (y - mu2) * jax.lax.rsqrt(var2 + LN_EPS) * ln_g + ln_b

    return kernel


def frame_embeddings_forward(params, frame_feat, type_embeddings=None,
                             frame_pos_ids=None, frame_masks=None):
    """Mirror of FrameEmbeddings.forward (eval mode) as one fused Pallas call."""
    Bq, S, F = frame_feat.shape
    H = params["w"].shape[1]
    rows = Bq * S
    use_mask = frame_masks is not None

    x2 = frame_feat.reshape(rows, F)                       # lane-dense (rows, 128) slab

    # Fold position embeddings + linear bias [+ type embeddings] into ONE additive slab.
    if frame_pos_ids is None:
        pe = jnp.tile(params["pos_emb"][:S], (Bq, 1))      # (rows, H), sequential ids 0..S-1
    else:
        # TODO(synk): move this non-default row gather in-kernel (scalar-prefetched ids +
        # VMEM-resident pos_emb table) instead of a wrapper-side XLA gather.
        pe = jnp.take(params["pos_emb"], frame_pos_ids.astype(jnp.int32),
                      axis=0).reshape(rows, H)
    add = pe + params["b"][None, :]
    if type_embeddings is not None:
        add = add + type_embeddings.reshape(rows, H)

    # Pack all small per-channel params into a single (8, 128) tile -> one DMA.
    width = max(F, H)
    packed = jnp.zeros((8, width), jnp.float32)
    packed = packed.at[_ROW_FLN_G, :F].set(params["frame_ln_g"])
    packed = packed.at[_ROW_FLN_B, :F].set(params["frame_ln_b"])
    packed = packed.at[_ROW_LN_G, :H].set(params["ln_g"])
    packed = packed.at[_ROW_LN_B, :H].set(params["ln_b"])
    if use_mask:
        packed = packed.at[_ROW_M0, :F].set(params["mask_emb"][0])
        packed = packed.at[_ROW_M1, :F].set(params["mask_emb"][1])

    w_bf16 = params["w"].astype(jnp.bfloat16)              # bf16 MXU operand, half the bytes

    inputs = [x2]
    if use_mask:
        inputs.append(frame_masks.astype(jnp.float32).reshape(rows, 1))
    inputs += [w_bf16, packed, add]

    out2 = pl.pallas_call(
        _make_kernel(use_mask),
        out_shape=jax.ShapeDtypeStruct((rows, H), jnp.float32),
        in_specs=[_VMEM] * len(inputs),
        out_specs=_VMEM,
    )(*inputs)
    return out2.reshape(Bq, S, H)


# ---------------------------- parameters & reference ----------------------------
def init_params(key):
    k1, k2, k3 = jax.random.split(key, 3)
    mask_emb = jax.random.normal(k1, (2, FRAME_DIM), jnp.float32) * 0.02
    mask_emb = mask_emb.at[0].set(0.0)        # padding_idx=0
    return {
        "mask_emb":   mask_emb,
        "frame_ln_g": jnp.ones((FRAME_DIM,), jnp.float32),
        "frame_ln_b": jnp.zeros((FRAME_DIM,), jnp.float32),
        "w":          jax.random.normal(k2, (FRAME_DIM, HIDDEN), jnp.float32) * 0.02,
        "b":          jnp.zeros((HIDDEN,), jnp.float32),
        "pos_emb":    jax.random.normal(k3, (MAX_FRAME_SEQ_LEN, HIDDEN), jnp.float32) * 0.02,
        "ln_g":       jnp.ones((HIDDEN,), jnp.float32),
        "ln_b":       jnp.zeros((HIDDEN,), jnp.float32),
    }


def reference_forward(params, frame_feat, type_embeddings=None,
                      frame_pos_ids=None, frame_masks=None):
    """Pure-JAX reference matching the PyTorch module (eval mode)."""
    x = frame_feat
    if frame_masks is not None:
        x = x + jnp.take(params["mask_emb"], frame_masks.astype(jnp.int32), axis=0)
    mu = jnp.mean(x, -1, keepdims=True)
    var = jnp.mean(jnp.square(x - mu), -1, keepdims=True)
    xn = (x - mu) / jnp.sqrt(var + FRAME_LN_EPS) * params["frame_ln_g"] + params["frame_ln_b"]
    y = jnp.einsum("bsf,fh->bsh", xn, params["w"],
                   precision=jax.lax.Precision.HIGHEST) + params["b"]
    if frame_pos_ids is None:
        y = y + params["pos_emb"][: x.shape[1]][None]
    else:
        y = y + jnp.take(params["pos_emb"], frame_pos_ids, axis=0)
    if type_embeddings is not None:
        y = y + type_embeddings
    mu2 = jnp.mean(y, -1, keepdims=True)
    var2 = jnp.mean(jnp.square(y - mu2), -1, keepdims=True)
    return (y - mu2) / jnp.sqrt(var2 + LN_EPS) * params["ln_g"] + params["ln_b"]


# ---------------------------- driver ----------------------------
if __name__ == "__main__":
    key = jax.random.PRNGKey(0)
    kp, kf = jax.random.split(key)
    params = init_params(kp)

    frame_feature = jax.random.normal(kf, (B, S_FRAME, FRAME_DIM), jnp.float32)
    frame_masks = jnp.ones((B, S_FRAME), jnp.float32).at[1, 28:].set(0.0)

    fwd = jax.jit(frame_embeddings_forward)

    # masked path (mask-blend kernel variant)
    out_m = fwd(params, frame_feature, frame_masks=frame_masks)
    jax.block_until_ready(out_m)
    ref_m = reference_forward(params, frame_feature, frame_masks=frame_masks)

    # default path (no masks / pos ids / type emb): lighter kernel variant, fewer DMAs
    out_d = fwd(params, frame_feature)
    jax.block_until_ready(out_d)
    ref_d = reference_forward(params, frame_feature)

    for out, ref in ((out_m, ref_m), (out_d, ref_d)):
        assert out.shape == (B, S_FRAME, HIDDEN)
        assert not bool(jnp.any(jnp.isnan(out)))
        assert bool(jnp.allclose(out, ref, atol=2e-2, rtol=2e-2))
    print("KERNEL_OK")
</pallas_src>

<mosaic_0001>
module attributes {stable_mosaic.version = 11 : i64} {
  func.func @kernel(%arg0: memref<64x128xf32, #tpu.memory_space<vmem>>, %arg1: memref<64x1xf32, #tpu.memory_space<vmem>>, %arg2: memref<128x128xbf16, #tpu.memory_space<vmem>>, %arg3: memref<8x128xf32, #tpu.memory_space<vmem>>, %arg4: memref<64x128xf32, #tpu.memory_space<vmem>>, %arg5: memref<64x128xf32, #tpu.memory_space<vmem>>) attributes {dimension_semantics = [], scalar_prefetch = 0 : i64, scratch_operands = 0 : i64, tpu.core_type = #tpu.core_type<tc>} {
    %c0 = arith.constant 0 : index
    %c0_0 = arith.constant 0 : index
    %0 = vector.load %arg3[%c0, %c0_0] : memref<8x128xf32, #tpu.memory_space<vmem>>, vector<8x128xf32>
    %1 = vector.extract_strided_slice %0 {offsets = [0, 0], sizes = [1, 128], strides = [1, 1]} : vector<8x128xf32> to vector<1x128xf32>
    %2 = vector.extract_strided_slice %0 {offsets = [1, 0], sizes = [1, 128], strides = [1, 1]} : vector<8x128xf32> to vector<1x128xf32>
    %3 = vector.extract_strided_slice %0 {offsets = [2, 0], sizes = [1, 128], strides = [1, 1]} : vector<8x128xf32> to vector<1x128xf32>
    %4 = vector.extract_strided_slice %0 {offsets = [3, 0], sizes = [1, 128], strides = [1, 1]} : vector<8x128xf32> to vector<1x128xf32>
    %c0_1 = arith.constant 0 : index
    %c0_2 = arith.constant 0 : index
    %5 = vector.load %arg0[%c0_1, %c0_2] : memref<64x128xf32, #tpu.memory_space<vmem>>, vector<64x128xf32>
    %6 = vector.extract_strided_slice %0 {offsets = [4, 0], sizes = [1, 128], strides = [1, 1]} : vector<8x128xf32> to vector<1x128xf32>
    %7 = vector.extract_strided_slice %0 {offsets = [5, 0], sizes = [1, 128], strides = [1, 1]} : vector<8x128xf32> to vector<1x128xf32>
    %c0_3 = arith.constant 0 : index
    %c0_4 = arith.constant 0 : index
    %8 = vector.load %arg1[%c0_3, %c0_4] : memref<64x1xf32, #tpu.memory_space<vmem>>, vector<64x1xf32>
    %cst = arith.constant 1.000000e+00 : f32
    %9 = vector.broadcast %cst : f32 to vector<64x1xf32>
    %10 = arith.cmpf oge, %8, %9 : vector<64x1xf32>
    %11 = vector.shape_cast %10 : vector<64x1xi1> to vector<64x1xi1>
    %12 = vector.broadcast %11 : vector<64x1xi1> to vector<64x128xi1>
    %13 = vector.shape_cast %7 : vector<1x128xf32> to vector<1x128xf32>
    %14 = vector.broadcast %13 : vector<1x128xf32> to vector<64x128xf32>
    %15 = vector.shape_cast %6 : vector<1x128xf32> to vector<1x128xf32>
    %16 = vector.broadcast %15 : vector<1x128xf32> to vector<64x128xf32>
    %17 = arith.select %12, %14, %16 : vector<64x128xi1>, vector<64x128xf32>
    %18 = arith.addf %5, %17 : vector<64x128xf32>
    %cst_5 = arith.constant dense<0.000000e+00> : vector<64xf32>
    %19 = vector.multi_reduction <add>, %18, %cst_5 [1] : vector<64x128xf32> to vector<64xf32>
    %20 = vector.shape_cast %19 : vector<64xf32> to vector<64x1xf32>
    %cst_6 = arith.constant 1.280000e+02 : f32
    %21 = vector.broadcast %cst_6 : f32 to vector<64x1xf32>
    %22 = arith.divf %20, %21 : vector<64x1xf32>
    %23 = vector.broadcast %22 : vector<64x1xf32> to vector<64x128xf32>
    %24 = arith.subf %18, %23 : vector<64x128xf32>
    %25 = arith.mulf %24, %24 : vector<64x128xf32>
    %cst_7 = arith.constant dense<0.000000e+00> : vector<64xf32>
    %26 = vector.multi_reduction <add>, %25, %cst_7 [1] : vector<64x128xf32> to vector<64xf32>
    %27 = vector.shape_cast %26 : vector<64xf32> to vector<64x1xf32>
    %cst_8 = arith.constant 1.280000e+02 : f32
    %28 = vector.broadcast %cst_8 : f32 to vector<64x1xf32>
    %29 = arith.divf %27, %28 : vector<64x1xf32>
    %30 = vector.broadcast %22 : vector<64x1xf32> to vector<64x128xf32>
    %31 = arith.subf %18, %30 : vector<64x128xf32>
    %cst_9 = arith.constant 9.99999974E-6 : f32
    %32 = vector.broadcast %cst_9 : f32 to vector<64x1xf32>
    %33 = arith.addf %29, %32 : vector<64x1xf32>
    %34 = math.rsqrt %33 : vector<64x1xf32>
    %35 = vector.broadcast %34 : vector<64x1xf32> to vector<64x128xf32>
    %36 = arith.mulf %31, %35 : vector<64x128xf32>
    %37 = vector.broadcast %1 : vector<1x128xf32> to vector<64x128xf32>
    %38 = arith.mulf %36, %37 : vector<64x128xf32>
    %39 = vector.broadcast %2 : vector<1x128xf32> to vector<64x128xf32>
    %40 = arith.addf %38, %39 : vector<64x128xf32>
    %41 = arith.truncf %40 : vector<64x128xf32> to vector<64x128xbf16>
    %c0_10 = arith.constant 0 : index
    %c0_11 = arith.constant 0 : index
    %42 = vector.load %arg2[%c0_10, %c0_11] : memref<128x128xbf16, #tpu.memory_space<vmem>>, vector<128x128xbf16>
    %cst_12 = arith.constant dense<0.000000e+00> : vector<64x128xf32>
    %43 = tpu.matmul %41, %42, %cst_12 {dimension_numbers = #tpu.dot_dimension_numbers<[1], [0], [0], [1], [0, 0, 1, 1], [], []>} : vector<64x128xbf16>, vector<128x128xbf16>, vector<64x128xf32> -> vector<64x128xf32>
    %c0_13 = arith.constant 0 : index
    %c0_14 = arith.constant 0 : index
    %44 = vector.load %arg4[%c0_13, %c0_14] : memref<64x128xf32, #tpu.memory_space<vmem>>, vector<64x128xf32>
    %45 = arith.addf %43, %44 : vector<64x128xf32>
    %cst_15 = arith.constant dense<0.000000e+00> : vector<64xf32>
    %46 = vector.multi_reduction <add>, %45, %cst_15 [1] : vector<64x128xf32> to vector<64xf32>
    %47 = vector.shape_cast %46 : vector<64xf32> to vector<64x1xf32>
    %cst_16 = arith.constant 1.280000e+02 : f32
    %48 = vector.broadcast %cst_16 : f32 to vector<64x1xf32>
    %49 = arith.divf %47, %48 : vector<64x1xf32>
    %50 = vector.broadcast %49 : vector<64x1xf32> to vector<64x128xf32>
    %51 = arith.subf %45, %50 : vector<64x128xf32>
    %52 = arith.mulf %51, %51 : vector<64x128xf32>
    %cst_17 = arith.constant dense<0.000000e+00> : vector<64xf32>
    %53 = vector.multi_reduction <add>, %52, %cst_17 [1] : vector<64x128xf32> to vector<64xf32>
    %54 = vector.shape_cast %53 : vector<64xf32> to vector<64x1xf32>
    %cst_18 = arith.constant 1.280000e+02 : f32
    %55 = vector.broadcast %cst_18 : f32 to vector<64x1xf32>
    %56 = arith.divf %54, %55 : vector<64x1xf32>
    %57 = vector.broadcast %49 : vector<64x1xf32> to vector<64x128xf32>
    %58 = arith.subf %45, %57 : vector<64x128xf32>
    %cst_19 = arith.constant 9.99999974E-6 : f32
    %59 = vector.broadcast %cst_19 : f32 to vector<64x1xf32>
    %60 = arith.addf %56, %59 : vector<64x1xf32>
    %61 = math.rsqrt %60 : vector<64x1xf32>
    %62 = vector.broadcast %61 : vector<64x1xf32> to vector<64x128xf32>
    %63 = arith.mulf %58, %62 : vector<64x128xf32>
    %64 = vector.broadcast %3 : vector<1x128xf32> to vector<64x128xf32>
    %65 = arith.mulf %63, %64 : vector<64x128xf32>
    %66 = vector.broadcast %4 : vector<1x128xf32> to vector<64x128xf32>
    %67 = arith.addf %65, %66 : vector<64x128xf32>
    %c0_20 = arith.constant 0 : index
    %c0_21 = arith.constant 0 : index
    %68 = vector.load %arg5[%c0_20, %c0_21] : memref<64x128xf32, #tpu.memory_space<vmem>>, vector<64x128xf32>
    tpu.vector_store %arg5[%c0_20, %c0_21], %67 {strides = array<i32>} : memref<64x128xf32, #tpu.memory_space<vmem>>, vector<64x128xf32>,
    return
  }
}

</mosaic_0001>

<llo_original>
// kernel: frame_embeddings_forward.1
$region0: #{frame_embeddings_forward.1}
  #allocation0 [shape = 'u32[]', space=smem, size = 0x4, offset = 0x4, fixed_abs, tag = 'smem constant byte address 0x4 - core index']
  #allocation1 [shape = 'u32[144,128]{1,0:T(1,128)}', space=vmem, size = 0x12000, scoped, tag = 'internal scratch']
  %s0 = inlined_call_operand.vmem [shape: f32[64,128], index: 0, kind: input, shape index: {}]
  %s1 = inlined_call_operand.vmem [shape: f32[64,1], index: 1, kind: input, shape index: {}]
  %s2 = inlined_call_operand.vmem [shape: bf16[128,128], index: 2, kind: input, shape index: {}]
  %s3 = inlined_call_operand.vmem [shape: f32[8,128], index: 3, kind: input, shape index: {}]
  %s4 = inlined_call_operand.vmem [shape: f32[64,128], index: 4, kind: input, shape index: {}]
  %s5 = inlined_call_operand.hbm [shape: f32[64,128], index: 5, kind: output, shape index: {}]
  %s6 = sld [smem:[#allocation0]]
  $region30: #{frame_embeddings_forward.1} parent=0
    _
  %s8 = ssub.s32 1, %s6
  %s9 = scalar_select 0, %s8, %s6
  $region1: #{frame_embeddings_forward.1} parent=0
    #allocation2 [shape = 'u8[32768]{0}', space=vmem, size = 0x8000, scoped, tag = 'output window, operand 0, single buffered']
    #allocation3 [shape = 's32[1]{0}', space=sflag, size = 0x4, scoped, tag = 'scoped memory for frame_embeddings_forward.1']
    %10 = vsyncpa [#allocation3], 0
    // Predicated region
    $region2: #{frame_embeddings_forward.1} parent=1 // pred_check
      _
    $region3: #{frame_embeddings_forward.1} parent=1 // pred_check_branch
      %12 = sbr.rel (0) target = $region5
    $region4: #{frame_embeddings_forward.1} parent=1 // pred_region
      _
    $region5: #{frame_embeddings_forward.1} parent=1 // pred_fallthru
      _
    // Predicated region
    $region6: #{frame_embeddings_forward.1} parent=1 // pred_check
      _
    $region7: #{frame_embeddings_forward.1} parent=1 // pred_check_branch
      %14 = sbr.rel (0) target = $region9
    $region8: #{frame_embeddings_forward.1} parent=1 // pred_region
      _
    $region9: #{frame_embeddings_forward.1} parent=1 // pred_fallthru
      _
    // Predicated region
    $region10: #{frame_embeddings_forward.1} parent=1 // pred_check
      _
    $region11: #{frame_embeddings_forward.1} parent=1 // pred_check_branch
      %16 = sbr.rel (0) target = $region13
    $region12: #{frame_embeddings_forward.1} parent=1 // pred_region
      _
    $region13: #{frame_embeddings_forward.1} parent=1 // pred_fallthru
      _
    // Predicated region
    $region14: #{frame_embeddings_forward.1} parent=1 // pred_check
      _
    $region15: #{frame_embeddings_forward.1} parent=1 // pred_check_branch
      %18 = sbr.rel (0) target = $region17
    $region16: #{frame_embeddings_forward.1} parent=1 // pred_region
      _
    $region17: #{frame_embeddings_forward.1} parent=1 // pred_fallthru
      _
    // Predicated region
    $region18: #{frame_embeddings_forward.1} parent=1 // pred_check
      _
    $region19: #{frame_embeddings_forward.1} parent=1 // pred_check_branch
      %20 = sbr.rel (0) target = $region21
    $region20: #{frame_embeddings_forward.1} parent=1 // pred_region
      _
    $region21: #{frame_embeddings_forward.1} parent=1 // pred_fallthru
      _
    %v22 = vld [vmem:[%s3] sm:$0xff]
    %v23 = vld [vmem:[%s0] sm:$0xff]
    %v24 = vld [vmem:[%s0 + $0x8] sm:$0xff]
    %v25 = vld [vmem:[%s0 + $0x10] sm:$0xff]
    %v26 = vld [vmem:[%s0 + $0x18] sm:$0xff]
    %v27 = vld [vmem:[%s0 + $0x20] sm:$0xff]
    %v28 = vld [vmem:[%s0 + $0x28] sm:$0xff]
    %v29 = vld [vmem:[%s0 + $0x30] sm:$0xff]
    %v30 = vld [vmem:[%s0 + $0x38] sm:$0xff]
    %v31 = vld [vmem:[%s1] sm:$0xff]
    %v32 = vld [vmem:[%s1 + $0x8] sm:$0xff]
    %v33 = vld [vmem:[%s1 + $0x10] sm:$0xff]
    %v34 = vld [vmem:[%s1 + $0x18] sm:$0xff]
    %v35 = vld [vmem:[%s1 + $0x20] sm:$0xff]
    %v36 = vld [vmem:[%s1 + $0x28] sm:$0xff]
    %v37 = vld [vmem:[%s1 + $0x30] sm:$0xff]
    %v38 = vld [vmem:[%s1 + $0x38] sm:$0xff]
    %vm39 = vcmp.ge.f32.partialorder %v31, 1.0
    %vm40 = vcmp.ge.f32.partialorder %v32, 1.0
    %vm41 = vcmp.ge.f32.partialorder %v33, 1.0
    %vm42 = vcmp.ge.f32.partialorder %v34, 1.0
    %vm43 = vcmp.ge.f32.partialorder %v35, 1.0
    %vm44 = vcmp.ge.f32.partialorder %v36, 1.0
    %vm45 = vcmp.ge.f32.partialorder %v37, 1.0
    %vm46 = vcmp.ge.f32.partialorder %v38, 1.0
    %v47 = vsel %vm39, 1, 0
    %v48 = vsel %vm40, 1, 0
    %v49 = vsel %vm41, 1, 0
    %v50 = vsel %vm42, 1, 0
    %v51 = vsel %vm43, 1, 0
    %v52 = vsel %vm44, 1, 0
    %v53 = vsel %vm45, 1, 0
    %v54 = vsel %vm46, 1, 0
    %55 = vset.pattern.permute.xlu0 0
    %56 = vperm.xlu0 %55, %v47
    %v57 = vpop.permute.xlu0 %56
    %58 = vset.pattern.permute.xlu0 0
    %59 = vperm.xlu0 %58, %v48
    %v60 = vpop.permute.xlu0 %59
    %61 = vset.pattern.permute.xlu0 0
    %62 = vperm.xlu0 %61, %v49
    %v63 = vpop.permute.xlu0 %62
    %64 = vset.pattern.permute.xlu0 0
    %65 = vperm.xlu0 %64, %v50
    %v66 = vpop.permute.xlu0 %65
    %67 = vset.pattern.permute.xlu0 0
    %68 = vperm.xlu0 %67, %v51
    %v69 = vpop.permute.xlu0 %68
    %70 = vset.pattern.permute.xlu0 0
    %71 = vperm.xlu0 %70, %v52
    %v72 = vpop.permute.xlu0 %71
    %73 = vset.pattern.permute.xlu0 0
    %74 = vperm.xlu0 %73, %v53
    %v75 = vpop.permute.xlu0 %74
    %76 = vset.pattern.permute.xlu0 0
    %77 = vperm.xlu0 %76, %v54
    %v78 = vpop.permute.xlu0 %77
    %vm79 = vcmp.eq.s32.totalorder %v57, 1
    %vm80 = vcmp.eq.s32.totalorder %v60, 1
    %vm81 = vcmp.eq.s32.totalorder %v63, 1
    %vm82 = vcmp.eq.s32.totalorder %v66, 1
    %vm83 = vcmp.eq.s32.totalorder %v69, 1
    %vm84 = vcmp.eq.s32.totalorder %v72, 1
    %vm85 = vcmp.eq.s32.totalorder %v75, 1
    %vm86 = vcmp.eq.s32.totalorder %v78, 1
    %v87 = vlaneseq
    %v88 = vshrl.u32 %v87, 7
    %v89 = vsub.s32 5, %v88
    %v90 = vrot.slane %v22, %v89
    %v91 = vlaneseq
    %v92 = vshrl.u32 %v91, 7
    %v93 = vsub.s32 4, %v92
    %v94 = vrot.slane %v22, %v93
    %v95 = vsel %vm79, %v90, %v94
    %v96 = vsel %vm80, %v90, %v94
    %v97 = vsel %vm81, %v90, %v94
    %v98 = vsel %vm82, %v90, %v94
    %v99 = vsel %vm83, %v90, %v94
    %v100 = vsel %vm84, %v90, %v94
    %v101 = vsel %vm85, %v90, %v94
    %v102 = vsel %vm86, %v90, %v94
    %v103 = vadd.f32 %v23, %v95
    %v104 = vadd.f32 %v24, %v96
    %v105 = vadd.f32 %v25, %v97
    %v106 = vadd.f32 %v26, %v98
    %v107 = vadd.f32 %v27, %v99
    %v108 = vadd.f32 %v28, %v100
    %v109 = vadd.f32 %v29, %v101
    %v110 = vadd.f32 %v30, %v102
    %111 = vadd.xlane.f32.xlu0 %v103
    %v112 = vpop.xlane.xlu0 %111
    %113 = vadd.xlane.f32.xlu0 %v104
    %v114 = vpop.xlane.xlu0 %113
    %115 = vadd.xlane.f32.xlu0 %v105
    %v116 = vpop.xlane.xlu0 %115
    %117 = vadd.xlane.f32.xlu0 %v106
    %v118 = vpop.xlane.xlu0 %117
    %119 = vadd.xlane.f32.xlu0 %v107
    %v120 = vpop.xlane.xlu0 %119
    %121 = vadd.xlane.f32.xlu0 %v108
    %v122 = vpop.xlane.xlu0 %121
    %123 = vadd.xlane.f32.xlu0 %v109
    %v124 = vpop.xlane.xlu0 %123
    %125 = vadd.xlane.f32.xlu0 %v110
    %v126 = vpop.xlane.xlu0 %125
    %v127 = vrcp.pop 128.0
    %v128 = vmul.f32 %v112, %v127
    %v129 = vmul.f32 %v114, %v127
    %v130 = vmul.f32 %v116, %v127
    %v131 = vmul.f32 %v118, %v127
    %v132 = vmul.f32 %v120, %v127
    %v133 = vmul.f32 %v122, %v127
    %v134 = vmul.f32 %v124, %v127
    %v135 = vmul.f32 %v126, %v127
    %v136 = vsub.f32 %v103, %v128
    %v137 = vsub.f32 %v104, %v129
    %v138 = vsub.f32 %v105, %v130
    %v139 = vsub.f32 %v106, %v131
    %v140 = vsub.f32 %v107, %v132
    %v141 = vsub.f32 %v108, %v133
    %v142 = vsub.f32 %v109, %v134
    %v143 = vsub.f32 %v110, %v135
    %v144 = vmul.f32 %v136, %v136
    %v145 = vmul.f32 %v137, %v137
    %v146 = vmul.f32 %v138, %v138
    %v147 = vmul.f32 %v139, %v139
    %v148 = vmul.f32 %v140, %v140
    %v149 = vmul.f32 %v141, %v141
    %v150 = vmul.f32 %v142, %v142
    %v151 = vmul.f32 %v143, %v143
    %152 = vadd.xlane.f32.xlu0 %v144
    %v153 = vpop.xlane.xlu0 %152
    %154 = vadd.xlane.f32.xlu0 %v145
    %v155 = vpop.xlane.xlu0 %154
    %156 = vadd.xlane.f32.xlu0 %v146
    %v157 = vpop.xlane.xlu0 %156
    %158 = vadd.xlane.f32.xlu0 %v147
    %v159 = vpop.xlane.xlu0 %158
    %160 = vadd.xlane.f32.xlu0 %v148
    %v161 = vpop.xlane.xlu0 %160
    %162 = vadd.xlane.f32.xlu0 %v149
    %v163 = vpop.xlane.xlu0 %162
    %164 = vadd.xlane.f32.xlu0 %v150
    %v165 = vpop.xlane.xlu0 %164
    %166 = vadd.xlane.f32.xlu0 %v151
    %v167 = vpop.xlane.xlu0 %166
    %v168 = vmul.f32 %v153, %v127
    %v169 = vmul.f32 %v155, %v127
    %v170 = vmul.f32 %v157, %v127
    %v171 = vmul.f32 %v159, %v127
    %v172 = vmul.f32 %v161, %v127
    %v173 = vmul.f32 %v163, %v127
    %v174 = vmul.f32 %v165, %v127
    %v175 = vmul.f32 %v167, %v127
    %v176 = vadd.f32 %v168, 1e-05
    %v177 = vadd.f32 %v169, 1e-05
    %v178 = vadd.f32 %v170, 1e-05
    %v179 = vadd.f32 %v171, 1e-05
    %v180 = vadd.f32 %v172, 1e-05
    %v181 = vadd.f32 %v173, 1e-05
    %v182 = vadd.f32 %v174, 1e-05
    %v183 = vadd.f32 %v175, 1e-05
    %v184 = vrsqrt.pop %v176
    %v185 = vrsqrt.pop %v177
    %v186 = vrsqrt.pop %v178
    %v187 = vrsqrt.pop %v179
    %v188 = vrsqrt.pop %v180
    %v189 = vrsqrt.pop %v181
    %v190 = vrsqrt.pop %v182
    %v191 = vrsqrt.pop %v183
    %v192 = vmul.f32 %v136, %v184
    %v193 = vmul.f32 %v137, %v185
    %v194 = vmul.f32 %v138, %v186
    %v195 = vmul.f32 %v139, %v187
    %v196 = vmul.f32 %v140, %v188
    %v197 = vmul.f32 %v141, %v189
    %v198 = vmul.f32 %v142, %v190
    %v199 = vmul.f32 %v143, %v191
    %v200 = vlaneseq
    %v201 = vshrl.u32 %v200, 7
    %v202 = vsub.s32 0, %v201
    %v203 = vrot.slane %v22, %v202
    %v204 = vmul.f32 %v192, %v203
    %v205 = vmul.f32 %v193, %v203
    %v206 = vmul.f32 %v194, %v203
    %v207 = vmul.f32 %v195, %v203
    %v208 = vmul.f32 %v196, %v203
    %v209 = vmul.f32 %v197, %v203
    %v210 = vmul.f32 %v198, %v203
    %v211 = vmul.f32 %v199, %v203
    %v212 = vlaneseq
    %v213 = vshrl.u32 %v212, 7
    %v214 = vsub.s32 1, %v213
    %v215 = vrot.slane %v22, %v214
    %v216 = vadd.f32 %v204, %v215
    %v217 = vadd.f32 %v205, %v215
    %v218 = vadd.f32 %v206, %v215
    %v219 = vadd.f32 %v207, %v215
    %v220 = vadd.f32 %v208, %v215
    %v221 = vadd.f32 %v209, %v215
    %v222 = vadd.f32 %v210, %v215
    %v223 = vadd.f32 %v211, %v215
    %v224 = vpack.c.bf16 %v217, %v216
    %v225 = vpack.c.bf16 %v219, %v218
    %v226 = vpack.c.bf16 %v221, %v220
    %v227 = vpack.c.bf16 %v223, %v222
    %v228 = vld [vmem:[%s2] sm:$0xf]
    %v229 = vld [vmem:[%s2 + $0x4] sm:$0xf]
    %v230 = vld [vmem:[%s2 + $0x8] sm:$0xf]
    %v231 = vld [vmem:[%s2 + $0xc] sm:$0xf]
    %v232 = vld [vmem:[%s2 + $0x10] sm:$0xf]
    %v233 = vld [vmem:[%s2 + $0x14] sm:$0xf]
    %v234 = vld [vmem:[%s2 + $0x18] sm:$0xf]
    %v235 = vld [vmem:[%s2 + $0x1c] sm:$0xf]
    %v236 = vld [vmem:[%s2 + $0x20] sm:$0xf]
    %v237 = vld [vmem:[%s2 + $0x24] sm:$0xf]
    %v238 = vld [vmem:[%s2 + $0x28] sm:$0xf]
    %v239 = vld [vmem:[%s2 + $0x2c] sm:$0xf]
    %v240 = vld [vmem:[%s2 + $0x30] sm:$0xf]
    %v241 = vld [vmem:[%s2 + $0x34] sm:$0xf]
    %v242 = vld [vmem:[%s2 + $0x38] sm:$0xf]
    %v243 = vld [vmem:[%s2 + $0x3c] sm:$0xf]
    %v244 = vld [vmem:[%s4] sm:$0xff]
    %v245 = vld [vmem:[%s4 + $0x8] sm:$0xff]
    %v246 = vld [vmem:[%s4 + $0x10] sm:$0xff]
    %v247 = vld [vmem:[%s4 + $0x18] sm:$0xff]
    %v248 = vld [vmem:[%s4 + $0x20] sm:$0xff]
    %v249 = vld [vmem:[%s4 + $0x28] sm:$0xff]
    %v250 = vld [vmem:[%s4 + $0x30] sm:$0xff]
    %v251 = vld [vmem:[%s4 + $0x38] sm:$0xff]
    %v268 = vunpack.c.l.b16 %v228
    %v269 = vunpack.c.l.b16 %v229
    %v270 = vunpack.c.l.b16 %v230
    %v271 = vunpack.c.l.b16 %v231
    %v272 = vunpack.c.l.b16 %v232
    %v273 = vunpack.c.l.b16 %v233
    %v274 = vunpack.c.l.b16 %v234
    %v275 = vunpack.c.l.b16 %v235
    %v276 = vunpack.c.l.b16 %v236
    %v277 = vunpack.c.l.b16 %v237
    %v278 = vunpack.c.l.b16 %v238
    %v279 = vunpack.c.l.b16 %v239
    %v280 = vunpack.c.l.b16 %v240
    %v281 = vunpack.c.l.b16 %v241
    %v282 = vunpack.c.l.b16 %v242
    %v283 = vunpack.c.l.b16 %v243
    %v284 = vpack.c.b16 %v269, %v268
    %v285 = vpack.c.b16 %v271, %v270
    %v286 = vpack.c.b16 %v273, %v272
    %v287 = vpack.c.b16 %v275, %v274
    %v288 = vpack.c.b16 %v277, %v276
    %v289 = vpack.c.b16 %v279, %v278
    %v290 = vpack.c.b16 %v281, %v280
    %v291 = vpack.c.b16 %v283, %v282
    %300 = vmatprep.subr.bf16.mxu0 0
    %301 = vmatpush1.bf16.msra.mxu0 %v284
    %302 = vmatprep.subr.bf16.mxu0 0
    %303 = vmatpush1.bf16.msra.mxu0 %v285
    %304 = vmatprep.subr.bf16.mxu0 0
    %305 = vmatpush1.bf16.msra.mxu0 %v286
    %306 = vmatprep.subr.bf16.mxu0 0
    %307 = vmatpush1.bf16.msra.mxu0 %v287
    %308 = vmatprep.subr.bf16.mxu0 0
    %309 = vmatpush1.bf16.msra.mxu0 %v288
    %310 = vmatprep.subr.bf16.mxu0 0
    %311 = vmatpush1.bf16.msra.mxu0 %v289
    %312 = vmatprep.subr.bf16.mxu0 0
    %313 = vmatpush1.bf16.msra.mxu0 %v290
    %314 = vmatprep.subr.bf16.mxu0 0
    %315 = vmatpush1.bf16.msra.mxu0 %v291
    %316 = vmatprep.subr.bf16.mxu0 0
    %317 = vmatpush1.bf16.msra.mxu0 0
    %318 = vmatprep.subr.bf16.mxu0 0
    %319 = vmatpush1.bf16.msra.mxu0 0
    %320 = vmatprep.subr.bf16.mxu0 0
    %321 = vmatpush1.bf16.msra.mxu0 0
    %322 = vmatprep.subr.bf16.mxu0 0
    %323 = vmatpush1.bf16.msra.mxu0 0
    %324 = vmatprep.subr.bf16.mxu0 0
    %325 = vmatpush1.bf16.msra.mxu0 0
    %326 = vmatprep.subr.bf16.mxu0 0
    %327 = vmatpush1.bf16.msra.mxu0 0
    %328 = vmatprep.subr.bf16.mxu0 0
    %329 = vmatpush1.bf16.msra.mxu0 0
    %330 = vmatprep.subr.bf16.mxu0 0
    %331 = vmatpush1.bf16.msra.mxu0 0
    %332 = vmatprep.mubr.bf16.mxu0 0
    %333 = vmatmul.mubr.bf16.gmra.mrb[0].mxu0 %v224
    %v334 = vpop.f32.mrb[0].mxu0
    %v335 = vadd.f32 %v244, %v334
    %v336 = vpop.f32.mrb[0].mxu0
    %v337 = vpop.f32.mrb[0].mxu0
    %v338 = vadd.f32 %v245, %v337
    %v339 = vpop.f32.mrb[0].mxu0
    %340 = vmatprep.mubr.bf16.mxu0 0
    %341 = vmatmul.mubr.bf16.gmra.mrb[0].mxu0 %v225
    %v342 = vpop.f32.mrb[0].mxu0
    %v343 = vadd.f32 %v246, %v342
    %v344 = vpop.f32.mrb[0].mxu0
    %v345 = vpop.f32.mrb[0].mxu0
    %v346 = vadd.f32 %v247, %v345
    %v347 = vpop.f32.mrb[0].mxu0
    %348 = vmatprep.mubr.bf16.mxu0 0
    %349 = vmatmul.mubr.bf16.gmra.mrb[0].mxu0 %v226
    %v350 = vpop.f32.mrb[0].mxu0
    %v351 = vadd.f32 %v248, %v350
    %v352 = vpop.f32.mrb[0].mxu0
    %v353 = vpop.f32.mrb[0].mxu0
    %v354 = vadd.f32 %v249, %v353
    %v355 = vpop.f32.mrb[0].mxu0
    %356 = vmatprep.mubr.bf16.mxu0 0
    %357 = vmatmul.mubr.bf16.gmra.mrb[0].mxu0 %v227
    %v358 = vpop.f32.mrb[0].mxu0
    %v359 = vadd.f32 %v250, %v358
    %v360 = vpop.f32.mrb[0].mxu0
    %v361 = vpop.f32.mrb[0].mxu0
    %v362 = vadd.f32 %v251, %v361
    %v363 = vpop.f32.mrb[0].mxu0
    %364 = vdwg.mxu0
    %365 = vadd.xlane.f32.xlu0 %v335
    %v366 = vpop.xlane.xlu0 %365
    %367 = vadd.xlane.f32.xlu0 %v338
    %v368 = vpop.xlane.xlu0 %367
    %369 = vadd.xlane.f32.xlu0 %v343
    %v370 = vpop.xlane.xlu0 %369
    %371 = vadd.xlane.f32.xlu0 %v346
    %v372 = vpop.xlane.xlu0 %371
    %373 = vadd.xlane.f32.xlu0 %v351
    %v374 = vpop.xlane.xlu0 %373
    %375 = vadd.xlane.f32.xlu0 %v354
    %v376 = vpop.xlane.xlu0 %375
    %377 = vadd.xlane.f32.xlu0 %v359
    %v378 = vpop.xlane.xlu0 %377
    %379 = vadd.xlane.f32.xlu0 %v362
    %v380 = vpop.xlane.xlu0 %379
    %v381 = vmul.f32 %v366, %v127
    %v382 = vmul.f32 %v368, %v127
    %v383 = vmul.f32 %v370, %v127
    %v384 = vmul.f32 %v372, %v127
    %v385 = vmul.f32 %v374, %v127
    %v386 = vmul.f32 %v376, %v127
    %v387 = vmul.f32 %v378, %v127
    %v388 = vmul.f32 %v380, %v127
    %v389 = vsub.f32 %v335, %v381
    %v390 = vsub.f32 %v338, %v382
    %v391 = vsub.f32 %v343, %v383
    %v392 = vsub.f32 %v346, %v384
    %v393 = vsub.f32 %v351, %v385
    %v394 = vsub.f32 %v354, %v386
    %v395 = vsub.f32 %v359, %v387
    %v396 = vsub.f32 %v362, %v388
    %v397 = vmul.f32 %v389, %v389
    %v398 = vmul.f32 %v390, %v390
    %v399 = vmul.f32 %v391, %v391
    %v400 = vmul.f32 %v392, %v392
    %v401 = vmul.f32 %v393, %v393
    %v402 = vmul.f32 %v394, %v394
    %v403 = vmul.f32 %v395, %v395
    %v404 = vmul.f32 %v396, %v396
    %405 = vadd.xlane.f32.xlu0 %v397
    %v406 = vpop.xlane.xlu0 %405
    %407 = vadd.xlane.f32.xlu0 %v398
    %v408 = vpop.xlane.xlu0 %407
    %409 = vadd.xlane.f32.xlu0 %v399
    %v410 = vpop.xlane.xlu0 %409
    %411 = vadd.xlane.f32.xlu0 %v400
    %v412 = vpop.xlane.xlu0 %411
    %413 = vadd.xlane.f32.xlu0 %v401
    %v414 = vpop.xlane.xlu0 %413
    %415 = vadd.xlane.f32.xlu0 %v402
    %v416 = vpop.xlane.xlu0 %415
    %417 = vadd.xlane.f32.xlu0 %v403
    %v418 = vpop.xlane.xlu0 %417
    %419 = vadd.xlane.f32.xlu0 %v404
    %v420 = vpop.xlane.xlu0 %419
    %v421 = vmul.f32 %v406, %v127
    %v422 = vmul.f32 %v408, %v127
    %v423 = vmul.f32 %v410, %v127
    %v424 = vmul.f32 %v412, %v127
    %v425 = vmul.f32 %v414, %v127
    %v426 = vmul.f32 %v416, %v127
    %v427 = vmul.f32 %v418, %v127
    %v428 = vmul.f32 %v420, %v127
    %v429 = vadd.f32 %v421, 1e-05
    %v430 = vadd.f32 %v422, 1e-05
    %v431 = vadd.f32 %v423, 1e-05
    %v432 = vadd.f32 %v424, 1e-05
    %v433 = vadd.f32 %v425, 1e-05
    %v434 = vadd.f32 %v426, 1e-05
    %v435 = vadd.f32 %v427, 1e-05
    %v436 = vadd.f32 %v428, 1e-05
    %v437 = vrsqrt.pop %v429
    %v438 = vrsqrt.pop %v430
    %v439 = vrsqrt.pop %v431
    %v440 = vrsqrt.pop %v432
    %v441 = vrsqrt.pop %v433
    %v442 = vrsqrt.pop %v434
    %v443 = vrsqrt.pop %v435
    %v444 = vrsqrt.pop %v436
    %v445 = vmul.f32 %v389, %v437
    %v446 = vmul.f32 %v390, %v438
    %v447 = vmul.f32 %v391, %v439
    %v448 = vmul.f32 %v392, %v440
    %v449 = vmul.f32 %v393, %v441
    %v450 = vmul.f32 %v394, %v442
    %v451 = vmul.f32 %v395, %v443
    %v452 = vmul.f32 %v396, %v444
    %v453 = vlaneseq
    %v454 = vshrl.u32 %v453, 7
    %v455 = vsub.s32 2, %v454
    %v456 = vrot.slane %v22, %v455
    %v457 = vmul.f32 %v445, %v456
    %v458 = vmul.f32 %v446, %v456
    %v459 = vmul.f32 %v447, %v456
    %v460 = vmul.f32 %v448, %v456
    %v461 = vmul.f32 %v449, %v456
    %v462 = vmul.f32 %v450, %v456
    %v463 = vmul.f32 %v451, %v456
    %v464 = vmul.f32 %v452, %v456
    %v465 = vlaneseq
    %v466 = vshrl.u32 %v465, 7
    %v467 = vsub.s32 3, %v466
    %v468 = vrot.slane %v22, %v467
    %v469 = vadd.f32 %v457, %v468
    %v470 = vadd.f32 %v458, %v468
    %v471 = vadd.f32 %v459, %v468
    %v472 = vadd.f32 %v460, %v468
    %v473 = vadd.f32 %v461, %v468
    %v474 = vadd.f32 %v462, %v468
    %v475 = vadd.f32 %v463, %v468
    %v476 = vadd.f32 %v464, %v468
    %477 = vst [vmem:[#allocation2] sm:$0xff] %v469
    %478 = vst [vmem:[#allocation2 + $0x8] sm:$0xff] %v470
    %479 = vst [vmem:[#allocation2 + $0x10] sm:$0xff] %v471
    %480 = vst [vmem:[#allocation2 + $0x18] sm:$0xff] %v472
    %481 = vst [vmem:[#allocation2 + $0x20] sm:$0xff] %v473
    %482 = vst [vmem:[#allocation2 + $0x28] sm:$0xff] %v474
    %483 = vst [vmem:[#allocation2 + $0x30] sm:$0xff] %v475
    %484 = vst [vmem:[#allocation2 + $0x38] sm:$0xff] %v476
    // Predicated region
    $region22: #{frame_embeddings_forward.1} parent=1 // pred_check
      _
    $region23: #{frame_embeddings_forward.1} parent=1 // pred_check_branch
      %486 = sbr.rel (0) target = $region25
    $region24: #{frame_embeddings_forward.1} parent=1 // pred_region
      %s488 = ssub.s32 1024, 1024
      %489 = vsyncadd [#allocation3], %s488
      %s490 = sshll.u32 [#allocation2], 4
      %s491 = int_to_ptr.vmem [resolvable:$true] %s490
      %496 = dma.vmem_to_hbm [thread:$0]  %s491, 1024, %s5, [#allocation3], 128, 128, 8
    $region25: #{frame_embeddings_forward.1} parent=1 // pred_fallthru
      _
    // Predicated region
    $region26: #{frame_embeddings_forward.1} parent=1 // pred_check
      _
    $region27: #{frame_embeddings_forward.1} parent=1 // pred_check_branch
      %498 = sbr.rel (0) target = $region29
    $region28: #{frame_embeddings_forward.1} parent=1 // pred_region
      %499 = dma.done [#allocation3], 1024
    $region29: #{frame_embeddings_forward.1} parent=1 // pred_fallthru
      _
    %500 = vsyncpa [#allocation3], 1

</llo_original>
